<compile_context>
chip_gen: v7x
topology: tpu7x:2x2x1
jax: 0.10.0
libtpu: 0.0.40
codegen_flags: <defaults>
</compile_context>

<pallas_src>
import functools

import jax
import jax.numpy as jnp
from jax.experimental import pallas as pl
from jax.experimental.pallas import tpu as pltpu


def _round_up(x, m):
    return ((x + m - 1) // m) * m


# --------------------------------------------------------------------------
# Kernel 1: EMA center update (scatter-mean via one-hot matmul on the MXU)
# --------------------------------------------------------------------------
def _update_center_kernel(center_ref, xrow_ref, trow_ref, newc_ref, *, alpha):
    c = center_ref[...].astype(jnp.float32)            # (K, D)
    x = xrow_ref[...].astype(jnp.float32)               # (Br, D)
    t = trow_ref[...]                                    # (1, Br) int32

    k, _ = c.shape
    br = x.shape[0]

    cls_idx = jax.lax.broadcasted_iota(jnp.int32, (k, br), 0)
    onehot = (cls_idx == t).astype(jnp.float32)          # (K, Br)

    sums = jnp.dot(onehot, x,
                   preferred_element_type=jnp.float32,
                   precision=jax.lax.Precision.HIGHEST)  # (K, D)
    counts = jnp.sum(onehot, axis=1, keepdims=True)      # (K, 1)

    mean = sums / jnp.maximum(counts, 1.0)
    blended = (1.0 - alpha) * c + alpha * mean
    newc_ref[...] = jnp.where(counts > 0.0, blended, c).astype(newc_ref.dtype)


# --------------------------------------------------------------------------
# Kernel 2: cosine-sim softmax + per-sample smoothing rate
# --------------------------------------------------------------------------
def _smooth_rate_kernel(center_ref, xcol_ref, tcol_ref, rate_ref, *,
                        epoch, num_classes):
    c = center_ref[...].astype(jnp.float32)              # (K, D)
    x = xcol_ref[...].astype(jnp.float32)                 # (TB, D)
    t = tcol_ref[...]                                      # (1, TB) int32

    # F.normalize(p=2, dim=1): x / max(||x||, 1e-12)
    cn = c / jnp.maximum(jnp.sqrt(jnp.sum(c * c, axis=-1, keepdims=True)), 1e-12)
    xn = x / jnp.maximum(jnp.sqrt(jnp.sum(x * x, axis=-1, keepdims=True)), 1e-12)

    # dist = cn @ xn.T  -> (K, TB), contract over the embedding dim
    dist = jax.lax.dot_general(cn, xn, (((1,), (1,)), ((), ())),
                               preferred_element_type=jnp.float32,
                               precision=jax.lax.Precision.HIGHEST)

    a = 1.0 + jnp.exp(dist)                               # (K, TB)
    sm = a / jnp.sum(a, axis=0, keepdims=True)             # column-normalized

    k, tb = dist.shape
    cls_idx = jax.lax.broadcasted_iota(jnp.int32, (k, tb), 0)
    sel = jnp.sum(jnp.where(cls_idx == t, sm, 0.0),
                  axis=0, keepdims=True)                    # (1, TB): sm[t_j, j]

    rate = jnp.minimum(jnp.exp(sel * epoch) / num_classes, 0.1)
    rate_ref[...] = rate.astype(rate_ref.dtype)


# --------------------------------------------------------------------------
# Wrapper: DynamicSmooth.forward
# --------------------------------------------------------------------------
def dynamic_smooth_forward(center, inputs_col, targets_col, inputs_row,
                           target_row, epoch, *, alpha=0.1, tile_b=512):
    """Returns (new_center, smooth_rate) matching DynamicSmooth.forward."""
    num_classes, emd = center.shape
    b_col = inputs_col.shape[0]
    b_row = inputs_row.shape[0]

    # TODO(synk): torch returns zeros_like(targets_col) (int dtype) on the
    # epoch==0 / empty-row branches; here float32 zeros are returned.
    if b_row == 0:
        return center, jnp.zeros((b_col,), jnp.float32)

    trow = target_row.reshape(1, b_row).astype(jnp.int32)

    new_center = pl.pallas_call(
        functools.partial(_update_center_kernel, alpha=float(alpha)),
        out_shape=jax.ShapeDtypeStruct((num_classes, emd), center.dtype),
        grid_spec=pltpu.PrefetchScalarGridSpec(
            num_scalar_prefetch=0,
            grid=(1,),
            in_specs=[
                pl.BlockSpec((num_classes, emd), lambda i: (0, 0)),
                pl.BlockSpec((b_row, emd), lambda i: (0, 0)),
                pl.BlockSpec((1, b_row), lambda i: (0, 0)),
            ],
            out_specs=pl.BlockSpec((num_classes, emd), lambda i: (0, 0)),
        ),
        compiler_params=pltpu.CompilerParams(
            dimension_semantics=("arbitrary",)),
    )(center, inputs_row, trow)

    if epoch == 0 or b_col == 0:
        return new_center, jnp.zeros((b_col,), jnp.float32)

    # ---- smooth-rate kernel: tile the inputs_col batch, lane-dense output ----
    tile = _round_up(min(tile_b, _round_up(b_col, 128)), 128)
    b_pad = _round_up(b_col, tile)
    tgt = targets_col.astype(jnp.int32)
    if b_pad != b_col:
        x_col = jnp.pad(inputs_col, ((0, b_pad - b_col), (0, 0)))
        tgt = jnp.pad(tgt, (0, b_pad - b_col))
    else:
        x_col = inputs_col
    tcol = tgt.reshape(1, b_pad)

    rate = pl.pallas_call(
        functools.partial(_smooth_rate_kernel,
                          epoch=float(epoch),
                          num_classes=float(num_classes)),
        out_shape=jax.ShapeDtypeStruct((1, b_pad), jnp.float32),
        grid_spec=pltpu.PrefetchScalarGridSpec(
            num_scalar_prefetch=0,
            grid=(b_pad // tile,),
            in_specs=[
                pl.BlockSpec((num_classes, emd), lambda i: (0, 0)),
                pl.BlockSpec((tile, emd), lambda i: (i, 0)),
                pl.BlockSpec((1, tile), lambda i: (0, i)),
            ],
            out_specs=pl.BlockSpec((1, tile), lambda i: (0, i)),
        ),
        compiler_params=pltpu.CompilerParams(
            dimension_semantics=("parallel",)),
    )(new_center, x_col, tcol)

    return new_center, rate[0, :b_col]


# --------------------------------------------------------------------------
# Pure-JAX reference (mirrors the torch code)
# --------------------------------------------------------------------------
def _reference(center, inputs_col, targets_col, inputs_row, target_row, epoch,
               *, alpha, num_classes):
    center = jnp.asarray(center, jnp.float32)
    x_row = jnp.asarray(inputs_row, jnp.float32)

    new_center = center
    for i in range(num_classes):
        mask = (target_row == i)
        cnt = jnp.sum(mask)
        mean = (jnp.sum(jnp.where(mask[:, None], x_row, 0.0), axis=0)
                / jnp.maximum(cnt, 1))
        upd = (1.0 - alpha) * center[i] + alpha * mean
        new_center = new_center.at[i].set(jnp.where(cnt > 0, upd, center[i]))

    def normalize(v):
        n = jnp.sqrt(jnp.sum(v * v, axis=1, keepdims=True))
        return v / jnp.maximum(n, 1e-12)

    dist = jnp.matmul(normalize(new_center),
                      normalize(jnp.asarray(inputs_col, jnp.float32)).T,
                      precision=jax.lax.Precision.HIGHEST)
    a = 1.0 + jnp.exp(dist)
    sm = a / jnp.sum(a, axis=0, keepdims=True)

    if epoch == 0:
        rate = jnp.zeros((targets_col.shape[0],), jnp.float32)
    else:
        sel = sm[targets_col, jnp.arange(targets_col.shape[0])]
        rate = jnp.minimum(jnp.exp(sel * epoch) / num_classes, 0.1)
    return new_center, rate


if __name__ == "__main__":
    num_classes, emd = 16, 256
    b_col, b_row = 8, 16
    epoch = 2

    key = jax.random.PRNGKey(0)
    k1, k2, k3, k4, k5 = jax.random.split(key, 5)
    center = jax.random.uniform(k1, (num_classes, emd), jnp.float32) / num_classes
    inputs_col = jax.random.normal(k2, (b_col, emd), jnp.float32)
    targets_col = jax.random.randint(k3, (b_col,), 0, num_classes, jnp.int32)
    inputs_row = jax.random.normal(k4, (b_row, emd), jnp.float32)
    target_row = jax.random.randint(k5, (b_row,), 0, num_classes, jnp.int32)

    new_center, smooth_rate = dynamic_smooth_forward(
        center, inputs_col, targets_col, inputs_row, target_row, epoch,
        alpha=0.1)
    new_center = jax.block_until_ready(new_center)
    smooth_rate = jax.block_until_ready(smooth_rate)

    ref_center, ref_rate = _reference(
        center, inputs_col, targets_col, inputs_row, target_row, epoch,
        alpha=0.1, num_classes=num_classes)

    assert new_center.shape == (num_classes, emd)
    assert smooth_rate.shape == (b_col,)
    assert jnp.allclose(new_center, ref_center, atol=3e-5, rtol=1e-4), \
        "center mismatch"
    assert jnp.allclose(smooth_rate, ref_rate, atol=3e-5, rtol=1e-4), \
        "smooth_rate mismatch"

    # epoch == 0 branch: center is still updated, smooth rate is zero.
    c0, r0 = dynamic_smooth_forward(
        center, inputs_col, targets_col, inputs_row, target_row, 0, alpha=0.1)
    r0 = jax.block_until_ready(r0)
    assert jnp.allclose(jax.block_until_ready(c0), ref_center, atol=3e-5, rtol=1e-4)
    assert jnp.allclose(r0, jnp.zeros((b_col,), jnp.float32))

    print("KERNEL_OK")
</pallas_src>

<mosaic_0001>
module attributes {stable_mosaic.version = 11 : i64} {
  func.func @_update_center_kernel(%arg0: i32, %arg1: memref<16x256xf32, #tpu.memory_space<vmem>>, %arg2: memref<16x256xf32, #tpu.memory_space<vmem>>, %arg3: memref<1x16xi32, #tpu.memory_space<vmem>>, %arg4: memref<16x256xf32, #tpu.memory_space<vmem>>) attributes {dimension_semantics = [#tpu.dimension_semantics<arbitrary>], iteration_bounds = array<i64: 1>, scalar_prefetch = 0 : i64, scratch_operands = 0 : i64, tpu.core_type = #tpu.core_type<tc>, window_params = [{pipeline_mode = #tpu.pipeline_mode<synchronous>, transform_indices = @transform_0, window_bounds = array<i64: 16, 256>}, {pipeline_mode = #tpu.pipeline_mode<synchronous>, transform_indices = @transform_1, window_bounds = array<i64: 16, 256>}, {pipeline_mode = #tpu.pipeline_mode<synchronous>, transform_indices = @transform_2, window_bounds = array<i64: 1, 16>}, {pipeline_mode = #tpu.pipeline_mode<synchronous>, transform_indices = @transform_3, window_bounds = array<i64: 16, 256>}]} {
    %c0 = arith.constant 0 : index
    %c0_0 = arith.constant 0 : index
    %0 = vector.load %arg1[%c0, %c0_0] : memref<16x256xf32, #tpu.memory_space<vmem>>, vector<16x256xf32>
    %c0_1 = arith.constant 0 : index
    %c0_2 = arith.constant 0 : index
    %1 = vector.load %arg2[%c0_1, %c0_2] : memref<16x256xf32, #tpu.memory_space<vmem>>, vector<16x256xf32>
    %c0_3 = arith.constant 0 : index
    %c0_4 = arith.constant 0 : index
    %2 = vector.load %arg3[%c0_3, %c0_4] : memref<1x16xi32, #tpu.memory_space<vmem>>, vector<1x16xi32>
    %3 = tpu.iota {dimensions = array<i32: 0>} : vector<16x16xi32>
    %4 = vector.broadcast %2 : vector<1x16xi32> to vector<16x16xi32>
    %5 = arith.cmpi eq, %3, %4 : vector<16x16xi32>
    %6 = arith.extui %5 : vector<16x16xi1> to vector<16x16xi32>
    %7 = arith.sitofp %6 : vector<16x16xi32> to vector<16x16xf32>
    %cst = arith.constant dense<0.000000e+00> : vector<16x256xf32>
    %8 = tpu.matmul %7, %1, %cst {dimension_numbers = #tpu.dot_dimension_numbers<[1], [0], [0], [1], [0, 0, 1, 1], [], []>, precision = #tpu.contract_precision<fp32>} : vector<16x16xf32>, vector<16x256xf32>, vector<16x256xf32> -> vector<16x256xf32>
    %cst_5 = arith.constant dense<0.000000e+00> : vector<16xf32>
    %9 = vector.multi_reduction <add>, %7, %cst_5 [1] : vector<16x16xf32> to vector<16xf32>
    %10 = vector.shape_cast %9 : vector<16xf32> to vector<16x1xf32>
    %cst_6 = arith.constant 1.000000e+00 : f32
    %11 = vector.broadcast %cst_6 : f32 to vector<16x1xf32>
    %12 = arith.maximumf %10, %11 : vector<16x1xf32>
    %13 = vector.broadcast %12 : vector<16x1xf32> to vector<16x256xf32>
    %14 = arith.divf %8, %13 : vector<16x256xf32>
    %cst_7 = arith.constant 0.899999976 : f32
    %15 = vector.broadcast %cst_7 : f32 to vector<16x256xf32>
    %16 = arith.mulf %15, %0 : vector<16x256xf32>
    %cst_8 = arith.constant 1.000000e-01 : f32
    %17 = vector.broadcast %cst_8 : f32 to vector<16x256xf32>
    %18 = arith.mulf %17, %14 : vector<16x256xf32>
    %19 = arith.addf %16, %18 : vector<16x256xf32>
    %cst_9 = arith.constant 0.000000e+00 : f32
    %20 = vector.broadcast %cst_9 : f32 to vector<16x1xf32>
    %21 = arith.cmpf ogt, %10, %20 : vector<16x1xf32>
    %22 = vector.shape_cast %21 : vector<16x1xi1> to vector<16x1xi1>
    %23 = vector.broadcast %22 : vector<16x1xi1> to vector<16x256xi1>
    %24 = arith.select %23, %19, %0 : vector<16x256xi1>, vector<16x256xf32>
    %c0_10 = arith.constant 0 : index
    %c0_11 = arith.constant 0 : index
    %25 = vector.load %arg4[%c0_10, %c0_11] : memref<16x256xf32, #tpu.memory_space<vmem>>, vector<16x256xf32>
    tpu.vector_store %arg4[%c0_10, %c0_11], %24 {strides = array<i32>} : memref<16x256xf32, #tpu.memory_space<vmem>>, vector<16x256xf32>,
    return
  }
  func.func @transform_0(%arg0: i32) -> (i32, i32) {
    %c0_i32 = arith.constant 0 : i32
    %c0_i32_0 = arith.constant 0 : i32
    %c0_i32_1 = arith.constant 0 : i32
    return %c0_i32, %c0_i32_0 : i32, i32
  }
  func.func @transform_1(%arg0: i32) -> (i32, i32) {
    %c0_i32 = arith.constant 0 : i32
    %c0_i32_0 = arith.constant 0 : i32
    %c0_i32_1 = arith.constant 0 : i32
    return %c0_i32, %c0_i32_0 : i32, i32
  }
  func.func @transform_2(%arg0: i32) -> (i32, i32) {
    %c0_i32 = arith.constant 0 : i32
    %c0_i32_0 = arith.constant 0 : i32
    %c0_i32_1 = arith.constant 0 : i32
    return %c0_i32, %c0_i32_0 : i32, i32
  }
  func.func @transform_3(%arg0: i32) -> (i32, i32) {
    %c0_i32 = arith.constant 0 : i32
    %c0_i32_0 = arith.constant 0 : i32
    %c0_i32_1 = arith.constant 0 : i32
    return %c0_i32, %c0_i32_0 : i32, i32
  }
}

</mosaic_0001>

<llo_original>
// kernel: tpu_custom_call.1
$region0: #{tpu_custom_call.1}
  #allocation0 [shape = 'u32[]', space=smem, size = 0x4, offset = 0x4, fixed_abs, tag = 'smem constant byte address 0x4 - core index']
  #allocation1 [shape = 'u32[144,128]{1,0:T(1,128)}', space=vmem, size = 0x12000, scoped, tag = 'internal scratch']
  %s0 = inlined_call_operand.hbm [shape: f32[16,256], index: 0, kind: input, shape index: {}]
  %s1 = inlined_call_operand.hbm [shape: f32[16,256], index: 1, kind: input, shape index: {}]
  %s2 = inlined_call_operand.vmem [shape: s32[1,16], index: 2, kind: input, shape index: {}]
  %s3 = inlined_call_operand.hbm [shape: f32[16,256], index: 3, kind: output, shape index: {}]
  %s4 = sld [smem:[#allocation0]]
  $region30: #{tpu_custom_call.1} parent=0
    _
  %s6 = ssub.s32 1, %s4
  %s7 = scalar_select 0, %s6, %s4
  $region1: #{tpu_custom_call.1} parent=0
    #allocation2 [shape = 'u8[16384]{0}', space=vmem, size = 0x4000, scoped, tag = 'input window, operand 0, single buffered']
    #allocation3 [shape = 's32[1]{0}', space=sflag, size = 0x4, scoped, tag = 'scoped memory for tpu_custom_call.1']
    #allocation4 [shape = 's32[1]{0}', space=sflag, size = 0x4, scoped, tag = 'scoped memory for tpu_custom_call.1']
    #allocation5 [shape = 'u8[16384]{0}', space=vmem, size = 0x4000, scoped, tag = 'input window, operand 1, single buffered']
    #allocation6 [shape = 's32[1]{0}', space=sflag, size = 0x4, scoped, tag = 'scoped memory for tpu_custom_call.1']
    #allocation7 [shape = 'u8[16384]{0}', space=vmem, size = 0x4000, scoped, tag = 'output window, operand 0, single buffered']
    %8 = vsyncpa [#allocation3], 0
    %9 = vsyncpa [#allocation6], 0
    %10 = vsyncpa [#allocation4], 0
    // Predicated region
    $region2: #{tpu_custom_call.1} parent=1 // pred_check
      _
    $region3: #{tpu_custom_call.1} parent=1 // pred_check_branch
      %12 = sbr.rel (0) target = $region5
    $region4: #{tpu_custom_call.1} parent=1 // pred_region
      %s14 = ssub.s32 512, 512
      %15 = vsyncadd [#allocation3], %s14
      %s16 = sshll.u32 [#allocation2], 4
      %s17 = int_to_ptr.vmem [resolvable:$true] %s16
      %22 = dma.hbm_to_vmem [thread:$0]  %s0, 512, %s17, [#allocation3], 256, 256, 16
    $region5: #{tpu_custom_call.1} parent=1 // pred_fallthru
      _
    // Predicated region
    $region6: #{tpu_custom_call.1} parent=1 // pred_check
      _
    $region7: #{tpu_custom_call.1} parent=1 // pred_check_branch
      %24 = sbr.rel (0) target = $region9
    $region8: #{tpu_custom_call.1} parent=1 // pred_region
      %s26 = ssub.s32 512, 512
      %27 = vsyncadd [#allocation6], %s26
      %s28 = sshll.u32 [#allocation5], 4
      %s29 = int_to_ptr.vmem [resolvable:$true] %s28
      %34 = dma.hbm_to_vmem [thread:$0]  %s1, 512, %s29, [#allocation6], 256, 256, 16
    $region9: #{tpu_custom_call.1} parent=1 // pred_fallthru
      _
    // Predicated region
    $region10: #{tpu_custom_call.1} parent=1 // pred_check
      _
    $region11: #{tpu_custom_call.1} parent=1 // pred_check_branch
      %36 = sbr.rel (0) target = $region13
    $region12: #{tpu_custom_call.1} parent=1 // pred_region
      _
    $region13: #{tpu_custom_call.1} parent=1 // pred_fallthru
      _
    // Predicated region
    $region14: #{tpu_custom_call.1} parent=1 // pred_check
      _
    $region15: #{tpu_custom_call.1} parent=1 // pred_check_branch
      %38 = sbr.rel (0) target = $region17
    $region16: #{tpu_custom_call.1} parent=1 // pred_region
      %39 = dma.done [#allocation3], 512
    $region17: #{tpu_custom_call.1} parent=1 // pred_fallthru
      _
    // Predicated region
    $region18: #{tpu_custom_call.1} parent=1 // pred_check
      _
    $region19: #{tpu_custom_call.1} parent=1 // pred_check_branch
      %41 = sbr.rel (0) target = $region21
    $region20: #{tpu_custom_call.1} parent=1 // pred_region
      %42 = dma.done [#allocation6], 512
    $region21: #{tpu_custom_call.1} parent=1 // pred_fallthru
      _
    %v43 = vld [vmem:[#allocation2] sm:$0xff]
    %v44 = vld [vmem:[#allocation2 + $0x8] sm:$0xff]
    %v45 = vld [vmem:[#allocation2 + $0x10] sm:$0xff]
    %v46 = vld [vmem:[#allocation2 + $0x18] sm:$0xff]
    %v47 = vld [vmem:[#allocation5] sm:$0xff]
    %v48 = vld [vmem:[#allocation5 + $0x8] sm:$0xff]
    %v49 = vld [vmem:[#allocation5 + $0x10] sm:$0xff]
    %v50 = vld [vmem:[#allocation5 + $0x18] sm:$0xff]
    %v51 = vld [vmem:[%s2] sm:$0x1]
    %v52 = vlaneseq
    %v53 = vshrl.u32 %v52, 7
    %v54 = vadd.s32 %v53, 8
    %v55 = vlaneseq
    %v56 = vshrl.u32 %v55, 7
    %v57 = vsub.s32 0, %v56
    %v58 = vrot.slane %v51, %v57
    %vm59 = vcmp.eq.s32.totalorder %v53, %v58
    %vm60 = vcmp.eq.s32.totalorder %v54, %v58
    %v61 = vsel %vm59, 1, 0
    %v62 = vsel %vm60, 1, 0
    %v63 = vcvt.s32.f32 %v61
    %v64 = vcvt.s32.f32 %v62
    %vm65 = vcmask 130048
    %v67 = vsel %vm65, %v63, 0
    %v70 = vsel %vm65, %v64, 0
    %v72 = vand.u32 %v48, 4294901760
    %73 = vmatprep.subr.mxu0 %v72
    %v74 = vand.u32 %v47, 4294901760
    %75 = vmatpush1.msra.mxu0 %v74
    %v76 = vand.u32 %v50, 4294901760
    %77 = vmatprep.subr.mxu0 %v76
    %v78 = vand.u32 %v49, 4294901760
    %79 = vmatpush1.msra.mxu0 %v78
    %80 = vmatprep.subr.mxu0 0.0
    %81 = vmatpush1.msra.mxu0 0.0
    %82 = vmatprep.subr.mxu0 0.0
    %83 = vmatpush1.msra.mxu0 0.0
    %84 = vmatprep.subr.mxu0 0.0
    %85 = vmatpush1.msra.mxu0 0.0
    %86 = vmatprep.subr.mxu0 0.0
    %87 = vmatpush1.msra.mxu0 0.0
    %88 = vmatprep.subr.mxu0 0.0
    %89 = vmatpush1.msra.mxu0 0.0
    %90 = vmatprep.subr.mxu0 0.0
    %91 = vmatpush1.msra.mxu0 0.0
    %92 = vmatprep.subr.mxu0 0.0
    %93 = vmatpush1.msra.mxu0 0.0
    %94 = vmatprep.subr.mxu0 0.0
    %95 = vmatpush1.msra.mxu0 0.0
    %96 = vmatprep.subr.mxu0 0.0
    %97 = vmatpush1.msra.mxu0 0.0
    %98 = vmatprep.subr.mxu0 0.0
    %99 = vmatpush1.msra.mxu0 0.0
    %100 = vmatprep.subr.mxu0 0.0
    %101 = vmatpush1.msra.mxu0 0.0
    %102 = vmatprep.subr.mxu0 0.0
    %103 = vmatpush1.msra.mxu0 0.0
    %104 = vmatprep.subr.mxu0 0.0
    %105 = vmatpush1.msra.mxu0 0.0
    %106 = vmatprep.subr.mxu0 0.0
    %107 = vmatpush1.msra.mxu0 0.0
    %108 = vmatprep.subr.mxu0 0.0
    %109 = vmatpush1.msra.mxu0 0.0
    %110 = vmatprep.subr.mxu0 0.0
    %111 = vmatpush1.msra.mxu0 0.0
    %112 = vmatprep.subr.mxu0 0.0
    %113 = vmatpush1.msra.mxu0 0.0
    %114 = vmatprep.subr.mxu0 0.0
    %115 = vmatpush1.msra.mxu0 0.0
    %116 = vmatprep.subr.mxu0 0.0
    %117 = vmatpush1.msra.mxu0 0.0
    %118 = vmatprep.subr.mxu0 0.0
    %119 = vmatpush1.msra.mxu0 0.0
    %120 = vmatprep.subr.mxu0 0.0
    %121 = vmatpush1.msra.mxu0 0.0
    %122 = vmatprep.subr.mxu0 0.0
    %123 = vmatpush1.msra.mxu0 0.0
    %124 = vmatprep.subr.mxu0 0.0
    %125 = vmatpush1.msra.mxu0 0.0
    %126 = vmatprep.subr.mxu0 0.0
    %127 = vmatpush1.msra.mxu0 0.0
    %128 = vmatprep.subr.mxu0 0.0
    %129 = vmatpush1.msra.mxu0 0.0
    %130 = vmatprep.subr.mxu0 0.0
    %131 = vmatpush1.msra.mxu0 0.0
    %132 = vmatprep.subr.mxu0 0.0
    %133 = vmatpush1.msra.mxu0 0.0
    %134 = vmatprep.subr.mxu0 0.0
    %135 = vmatpush1.msra.mxu0 0.0
    %136 = vmatprep.subr.mxu0 0.0
    %137 = vmatpush1.msra.mxu0 0.0
    %138 = vmatprep.subr.mxu0 0.0
    %139 = vmatpush1.msra.mxu0 0.0
    %140 = vmatprep.mubr.f32.mxu0 0.0
    %v141 = vand.u32 %v67, 4294901760
    %v142 = vsub.f32 %v67, %v141
    %v143 = vand.u32 %v142, 4294901760
    %v144 = vsub.f32 %v142, %v143
    %v145 = vand.u32 %v144, 4294901760
    %146 = vmatmul.mubr.f32.gmra.mrb[0].mxu0 %v145
    %v147 = vpop.f32.mrb[0].mxu0
    %v148 = vadd.f32 0.0, %v147
    %v149 = vpop.f32.mrb[0].mxu0
    %v150 = vadd.f32 0.0, %v149
    %151 = vmatprep.mubr.f32.mxu0 0.0
    %v152 = vand.u32 %v70, 4294901760
    %v153 = vsub.f32 %v70, %v152
    %v154 = vand.u32 %v153, 4294901760
    %v155 = vsub.f32 %v153, %v154
    %v156 = vand.u32 %v155, 4294901760
    %157 = vmatmul.mubr.f32.gmra.mrb[0].mxu0 %v156
    %v158 = vpop.f32.mrb[0].mxu0
    %v159 = vadd.f32 0.0, %v158
    %v160 = vpop.f32.mrb[0].mxu0
    %v161 = vadd.f32 0.0, %v160
    %162 = vdwg.mxu0
    %v163 = vand.u32 %v48, 4294901760
    %v164 = vsub.f32 %v48, %v163
    %v165 = vand.u32 %v164, 4294901760
    %v166 = vsub.f32 %v164, %v165
    %v167 = vand.u32 %v166, 4294901760
    %168 = vmatprep.subr.mxu0 %v167
    %v169 = vand.u32 %v47, 4294901760
    %v170 = vsub.f32 %v47, %v169
    %v171 = vand.u32 %v170, 4294901760
    %v172 = vsub.f32 %v170, %v171
    %v173 = vand.u32 %v172, 4294901760
    %174 = vmatpush1.msra.mxu0 %v173
    %v175 = vand.u32 %v50, 4294901760
    %v176 = vsub.f32 %v50, %v175
    %v177 = vand.u32 %v176, 4294901760
    %v178 = vsub.f32 %v176, %v177
    %v179 = vand.u32 %v178, 4294901760
    %180 = vmatprep.subr.mxu0 %v179
    %v181 = vand.u32 %v49, 4294901760
    %v182 = vsub.f32 %v49, %v181
    %v183 = vand.u32 %v182, 4294901760
    %v184 = vsub.f32 %v182, %v183
    %v185 = vand.u32 %v184, 4294901760
    %186 = vmatpush1.msra.mxu0 %v185
    %187 = vmatprep.subr.mxu0 0.0
    %188 = vmatpush1.msra.mxu0 0.0
    %189 = vmatprep.subr.mxu0 0.0
    %190 = vmatpush1.msra.mxu0 0.0
    %191 = vmatprep.subr.mxu0 0.0
    %192 = vmatpush1.msra.mxu0 0.0
    %193 = vmatprep.subr.mxu0 0.0
    %194 = vmatpush1.msra.mxu0 0.0
    %195 = vmatprep.subr.mxu0 0.0
    %196 = vmatpush1.msra.mxu0 0.0
    %197 = vmatprep.subr.mxu0 0.0
    %198 = vmatpush1.msra.mxu0 0.0
    %199 = vmatprep.subr.mxu0 0.0
    %200 = vmatpush1.msra.mxu0 0.0
    %201 = vmatprep.subr.mxu0 0.0
    %202 = vmatpush1.msra.mxu0 0.0
    %203 = vmatprep.subr.mxu0 0.0
    %204 = vmatpush1.msra.mxu0 0.0
    %205 = vmatprep.subr.mxu0 0.0
    %206 = vmatpush1.msra.mxu0 0.0
    %207 = vmatprep.subr.mxu0 0.0
    %208 = vmatpush1.msra.mxu0 0.0
    %209 = vmatprep.subr.mxu0 0.0
    %210 = vmatpush1.msra.mxu0 0.0
    %211 = vmatprep.subr.mxu0 0.0
    %212 = vmatpush1.msra.mxu0 0.0
    %213 = vmatprep.subr.mxu0 0.0
    %214 = vmatpush1.msra.mxu0 0.0
    %215 = vmatprep.subr.mxu0 0.0
    %216 = vmatpush1.msra.mxu0 0.0
    %217 = vmatprep.subr.mxu0 0.0
    %218 = vmatpush1.msra.mxu0 0.0
    %219 = vmatprep.subr.mxu0 0.0
    %220 = vmatpush1.msra.mxu0 0.0
    %221 = vmatprep.subr.mxu0 0.0
    %222 = vmatpush1.msra.mxu0 0.0
    %223 = vmatprep.subr.mxu0 0.0
    %224 = vmatpush1.msra.mxu0 0.0
    %225 = vmatprep.subr.mxu0 0.0
    %226 = vmatpush1.msra.mxu0 0.0
    %227 = vmatprep.subr.mxu0 0.0
    %228 = vmatpush1.msra.mxu0 0.0
    %229 = vmatprep.subr.mxu0 0.0
    %230 = vmatpush1.msra.mxu0 0.0
    %231 = vmatprep.subr.mxu0 0.0
    %232 = vmatpush1.msra.mxu0 0.0
    %233 = vmatprep.subr.mxu0 0.0
    %234 = vmatpush1.msra.mxu0 0.0
    %235 = vmatprep.subr.mxu0 0.0
    %236 = vmatpush1.msra.mxu0 0.0
    %237 = vmatprep.subr.mxu0 0.0
    %238 = vmatpush1.msra.mxu0 0.0
    %239 = vmatprep.subr.mxu0 0.0
    %240 = vmatpush1.msra.mxu0 0.0
    %241 = vmatprep.subr.mxu0 0.0
    %242 = vmatpush1.msra.mxu0 0.0
    %243 = vmatprep.subr.mxu0 0.0
    %244 = vmatpush1.msra.mxu0 0.0
    %245 = vmatprep.subr.mxu0 0.0
    %246 = vmatpush1.msra.mxu0 0.0
    %247 = vmatprep.mubr.f32.mxu0 0.0
    %v248 = vand.u32 %v67, 4294901760
    %249 = vmatmul.mubr.f32.gmra.mrb[0].mxu0 %v248
    %v250 = vpop.f32.mrb[0].mxu0
    %v251 = vadd.f32 %v148, %v250
    %v252 = vpop.f32.mrb[0].mxu0
    %v253 = vadd.f32 %v150, %v252
    %254 = vmatprep.mubr.f32.mxu0 0.0
    %v255 = vand.u32 %v70, 4294901760
    %256 = vmatmul.mubr.f32.gmra.mrb[0].mxu0 %v255
    %v257 = vpop.f32.mrb[0].mxu0
    %v258 = vadd.f32 %v159, %v257
    %v259 = vpop.f32.mrb[0].mxu0
    %v260 = vadd.f32 %v161, %v259
    %261 = vdwg.mxu0
    %v262 = vand.u32 %v48, 4294901760
    %v263 = vsub.f32 %v48, %v262
    %264 = vmatprep.subr.mxu0 %v263
    %v265 = vand.u32 %v47, 4294901760
    %v266 = vsub.f32 %v47, %v265
    %267 = vmatpush1.msra.mxu0 %v266
    %v268 = vand.u32 %v50, 4294901760
    %v269 = vsub.f32 %v50, %v268
    %270 = vmatprep.subr.mxu0 %v269
    %v271 = vand.u32 %v49, 4294901760
    %v272 = vsub.f32 %v49, %v271
    %273 = vmatpush1.msra.mxu0 %v272
    %274 = vmatprep.subr.mxu0 0.0
    %275 = vmatpush1.msra.mxu0 0.0
    %276 = vmatprep.subr.mxu0 0.0
    %277 = vmatpush1.msra.mxu0 0.0
    %278 = vmatprep.subr.mxu0 0.0
    %279 = vmatpush1.msra.mxu0 0.0
    %280 = vmatprep.subr.mxu0 0.0
    %281 = vmatpush1.msra.mxu0 0.0
    %282 = vmatprep.subr.mxu0 0.0
    %283 = vmatpush1.msra.mxu0 0.0
    %284 = vmatprep.subr.mxu0 0.0
    %285 = vmatpush1.msra.mxu0 0.0
    %286 = vmatprep.subr.mxu0 0.0
    %287 = vmatpush1.msra.mxu0 0.0
    %288 = vmatprep.subr.mxu0 0.0
    %289 = vmatpush1.msra.mxu0 0.0
    %290 = vmatprep.subr.mxu0 0.0
    %291 = vmatpush1.msra.mxu0 0.0
    %292 = vmatprep.subr.mxu0 0.0
    %293 = vmatpush1.msra.mxu0 0.0
    %294 = vmatprep.subr.mxu0 0.0
    %295 = vmatpush1.msra.mxu0 0.0
    %296 = vmatprep.subr.mxu0 0.0
    %297 = vmatpush1.msra.mxu0 0.0
    %298 = vmatprep.subr.mxu0 0.0
    %299 = vmatpush1.msra.mxu0 0.0
    %300 = vmatprep.subr.mxu0 0.0
    %301 = vmatpush1.msra.mxu0 0.0
    %302 = vmatprep.subr.mxu0 0.0
    %303 = vmatpush1.msra.mxu0 0.0
    %304 = vmatprep.subr.mxu0 0.0
    %305 = vmatpush1.msra.mxu0 0.0
    %306 = vmatprep.subr.mxu0 0.0
    %307 = vmatpush1.msra.mxu0 0.0
    %308 = vmatprep.subr.mxu0 0.0
    %309 = vmatpush1.msra.mxu0 0.0
    %310 = vmatprep.subr.mxu0 0.0
    %311 = vmatpush1.msra.mxu0 0.0
    %312 = vmatprep.subr.mxu0 0.0
    %313 = vmatpush1.msra.mxu0 0.0
    %314 = vmatprep.subr.mxu0 0.0
    %315 = vmatpush1.msra.mxu0 0.0
    %316 = vmatprep.subr.mxu0 0.0
    %317 = vmatpush1.msra.mxu0 0.0
    %318 = vmatprep.subr.mxu0 0.0
    %319 = vmatpush1.msra.mxu0 0.0
    %320 = vmatprep.subr.mxu0 0.0
    %321 = vmatpush1.msra.mxu0 0.0
    %322 = vmatprep.subr.mxu0 0.0
    %323 = vmatpush1.msra.mxu0 0.0
    %324 = vmatprep.subr.mxu0 0.0
    %325 = vmatpush1.msra.mxu0 0.0
    %326 = vmatprep.subr.mxu0 0.0
    %327 = vmatpush1.msra.mxu0 0.0
    %328 = vmatprep.subr.mxu0 0.0
    %329 = vmatpush1.msra.mxu0 0.0
    %330 = vmatprep.subr.mxu0 0.0
    %331 = vmatpush1.msra.mxu0 0.0
    %332 = vmatprep.subr.mxu0 0.0
    %333 = vmatpush1.msra.mxu0 0.0
    %334 = vmatprep.mubr.f32.mxu0 0.0
    %v335 = vand.u32 %v67, 4294901760
    %v336 = vsub.f32 %v67, %v335
    %337 = vmatmul.mubr.f32.gmra.mrb[0].mxu0 %v336
    %v338 = vpop.f32.mrb[0].mxu0
    %v339 = vadd.f32 %v251, %v338
    %v340 = vpop.f32.mrb[0].mxu0
    %v341 = vadd.f32 %v253, %v340
    %342 = vmatprep.mubr.f32.mxu0 0.0
    %v343 = vand.u32 %v70, 4294901760
    %v344 = vsub.f32 %v70, %v343
    %345 = vmatmul.mubr.f32.gmra.mrb[0].mxu0 %v344
    %v346 = vpop.f32.mrb[0].mxu0
    %v347 = vadd.f32 %v258, %v346
    %v348 = vpop.f32.mrb[0].mxu0
    %v349 = vadd.f32 %v260, %v348
    %350 = vdwg.mxu0
    %v351 = vand.u32 %v48, 4294901760
    %352 = vmatprep.subr.mxu0 %v351
    %v353 = vand.u32 %v47, 4294901760
    %354 = vmatpush1.msra.mxu0 %v353
    %v355 = vand.u32 %v50, 4294901760
    %356 = vmatprep.subr.mxu0 %v355
    %v357 = vand.u32 %v49, 4294901760
    %358 = vmatpush1.msra.mxu0 %v357
    %359 = vmatprep.subr.mxu0 0.0
    %360 = vmatpush1.msra.mxu0 0.0
    %361 = vmatprep.subr.mxu0 0.0
    %362 = vmatpush1.msra.mxu0 0.0
    %363 = vmatprep.subr.mxu0 0.0
    %364 = vmatpush1.msra.mxu0 0.0
    %365 = vmatprep.subr.mxu0 0.0
    %366 = vmatpush1.msra.mxu0 0.0
    %367 = vmatprep.subr.mxu0 0.0
    %368 = vmatpush1.msra.mxu0 0.0
    %369 = vmatprep.subr.mxu0 0.0
    %370 = vmatpush1.msra.mxu0 0.0
    %371 = vmatprep.subr.mxu0 0.0
    %372 = vmatpush1.msra.mxu0 0.0
    %373 = vmatprep.subr.mxu0 0.0
    %374 = vmatpush1.msra.mxu0 0.0
    %375 = vmatprep.subr.mxu0 0.0
    %376 = vmatpush1.msra.mxu0 0.0
    %377 = vmatprep.subr.mxu0 0.0
    %378 = vmatpush1.msra.mxu0 0.0
    %379 = vmatprep.subr.mxu0 0.0
    %380 = vmatpush1.msra.mxu0 0.0
    %381 = vmatprep.subr.mxu0 0.0
    %382 = vmatpush1.msra.mxu0 0.0
    %383 = vmatprep.subr.mxu0 0.0
    %384 = vmatpush1.msra.mxu0 0.0
    %385 = vmatprep.subr.mxu0 0.0
    %386 = vmatpush1.msra.mxu0 0.0
    %387 = vmatprep.subr.mxu0 0.0
    %388 = vmatpush1.msra.mxu0 0.0
    %389 = vmatprep.subr.mxu0 0.0
    %390 = vmatpush1.msra.mxu0 0.0
    %391 = vmatprep.subr.mxu0 0.0
    %392 = vmatpush1.msra.mxu0 0.0
    %393 = vmatprep.subr.mxu0 0.0
    %394 = vmatpush1.msra.mxu0 0.0
    %395 = vmatprep.subr.mxu0 0.0
    %396 = vmatpush1.msra.mxu0 0.0
    %397 = vmatprep.subr.mxu0 0.0
    %398 = vmatpush1.msra.mxu0 0.0
    %399 = vmatprep.subr.mxu0 0.0
    %400 = vmatpush1.msra.mxu0 0.0
    %401 = vmatprep.subr.mxu0 0.0
    %402 = vmatpush1.msra.mxu0 0.0
    %403 = vmatprep.subr.mxu0 0.0
    %404 = vmatpush1.msra.mxu0 0.0
    %405 = vmatprep.subr.mxu0 0.0
    %406 = vmatpush1.msra.mxu0 0.0
    %407 = vmatprep.subr.mxu0 0.0
    %408 = vmatpush1.msra.mxu0 0.0
    %409 = vmatprep.subr.mxu0 0.0
    %410 = vmatpush1.msra.mxu0 0.0
    %411 = vmatprep.subr.mxu0 0.0
    %412 = vmatpush1.msra.mxu0 0.0
    %413 = vmatprep.subr.mxu0 0.0
    %414 = vmatpush1.msra.mxu0 0.0
    %415 = vmatprep.subr.mxu0 0.0
    %416 = vmatpush1.msra.mxu0 0.0
    %417 = vmatprep.subr.mxu0 0.0
    %418 = vmatpush1.msra.mxu0 0.0
    %419 = vmatprep.mubr.f32.mxu0 0.0
    %v420 = vand.u32 %v67, 4294901760
    %v421 = vsub.f32 %v67, %v420
    %v422 = vand.u32 %v421, 4294901760
    %423 = vmatmul.mubr.f32.gmra.mrb[0].mxu0 %v422
    %v424 = vpop.f32.mrb[0].mxu0
    %v425 = vadd.f32 %v339, %v424
    %v426 = vpop.f32.mrb[0].mxu0
    %v427 = vadd.f32 %v341, %v426
    %428 = vmatprep.mubr.f32.mxu0 0.0
    %v429 = vand.u32 %v70, 4294901760
    %v430 = vsub.f32 %v70, %v429
    %v431 = vand.u32 %v430, 4294901760
    %432 = vmatmul.mubr.f32.gmra.mrb[0].mxu0 %v431
    %v433 = vpop.f32.mrb[0].mxu0
    %v434 = vadd.f32 %v347, %v433
    %v435 = vpop.f32.mrb[0].mxu0
    %v436 = vadd.f32 %v349, %v435
    %437 = vdwg.mxu0
    %v438 = vand.u32 %v48, 4294901760
    %v439 = vsub.f32 %v48, %v438
    %v440 = vand.u32 %v439, 4294901760
    %441 = vmatprep.subr.mxu0 %v440
    %v442 = vand.u32 %v47, 4294901760
    %v443 = vsub.f32 %v47, %v442
    %v444 = vand.u32 %v443, 4294901760
    %445 = vmatpush1.msra.mxu0 %v444
    %v446 = vand.u32 %v50, 4294901760
    %v447 = vsub.f32 %v50, %v446
    %v448 = vand.u32 %v447, 4294901760
    %449 = vmatprep.subr.mxu0 %v448
    %v450 = vand.u32 %v49, 4294901760
    %v451 = vsub.f32 %v49, %v450
    %v452 = vand.u32 %v451, 4294901760
    %453 = vmatpush1.msra.mxu0 %v452
    %454 = vmatprep.subr.mxu0 0.0
    %455 = vmatpush1.msra.mxu0 0.0
    %456 = vmatprep.subr.mxu0 0.0
    %457 = vmatpush1.msra.mxu0 0.0
    %458 = vmatprep.subr.mxu0 0.0
    %459 = vmatpush1.msra.mxu0 0.0
    %460 = vmatprep.subr.mxu0 0.0
    %461 = vmatpush1.msra.mxu0 0.0
    %462 = vmatprep.subr.mxu0 0.0
    %463 = vmatpush1.msra.mxu0 0.0
    %464 = vmatprep.subr.mxu0 0.0
    %465 = vmatpush1.msra.mxu0 0.0
    %466 = vmatprep.subr.mxu0 0.0
    %467 = vmatpush1.msra.mxu0 0.0
    %468 = vmatprep.subr.mxu0 0.0
    %469 = vmatpush1.msra.mxu0 0.0
    %470 = vmatprep.subr.mxu0 0.0
    %471 = vmatpush1.msra.mxu0 0.0
    %472 = vmatprep.subr.mxu0 0.0
    %473 = vmatpush1.msra.mxu0 0.0
    %474 = vmatprep.subr.mxu0 0.0
    %475 = vmatpush1.msra.mxu0 0.0
    %476 = vmatprep.subr.mxu0 0.0
    %477 = vmatpush1.msra.mxu0 0.0
    %478 = vmatprep.subr.mxu0 0.0
    %479 = vmatpush1.msra.mxu0 0.0
    %480 = vmatprep.subr.mxu0 0.0
    %481 = vmatpush1.msra.mxu0 0.0
    %482 = vmatprep.subr.mxu0 0.0
    %483 = vmatpush1.msra.mxu0 0.0
    %484 = vmatprep.subr.mxu0 0.0
    %485 = vmatpush1.msra.mxu0 0.0
    %486 = vmatprep.subr.mxu0 0.0
    %487 = vmatpush1.msra.mxu0 0.0
    %488 = vmatprep.subr.mxu0 0.0
    %489 = vmatpush1.msra.mxu0 0.0
    %490 = vmatprep.subr.mxu0 0.0
    %491 = vmatpush1.msra.mxu0 0.0
    %492 = vmatprep.subr.mxu0 0.0
    %493 = vmatpush1.msra.mxu0 0.0
    %494 = vmatprep.subr.mxu0 0.0
    %495 = vmatpush1.msra.mxu0 0.0
    %496 = vmatprep.subr.mxu0 0.0
    %497 = vmatpush1.msra.mxu0 0.0
    %498 = vmatprep.subr.mxu0 0.0
    %499 = vmatpush1.msra.mxu0 0.0
    %500 = vmatprep.subr.mxu0 0.0
    %501 = vmatpush1.msra.mxu0 0.0
    %502 = vmatprep.subr.mxu0 0.0
    %503 = vmatpush1.msra.mxu0 0.0
    %504 = vmatprep.subr.mxu0 0.0
    %505 = vmatpush1.msra.mxu0 0.0
    %506 = vmatprep.subr.mxu0 0.0
    %507 = vmatpush1.msra.mxu0 0.0
    %508 = vmatprep.subr.mxu0 0.0
    %509 = vmatpush1.msra.mxu0 0.0
    %510 = vmatprep.subr.mxu0 0.0
    %511 = vmatpush1.msra.mxu0 0.0
    %512 = vmatprep.subr.mxu0 0.0
    %513 = vmatpush1.msra.mxu0 0.0
    %514 = vmatprep.mubr.f32.mxu0 0.0
    %v515 = vand.u32 %v67, 4294901760
    %516 = vmatmul.mubr.f32.gmra.mrb[0].mxu0 %v515
    %v517 = vpop.f32.mrb[0].mxu0
    %v518 = vadd.f32 %v425, %v517
    %v519 = vpop.f32.mrb[0].mxu0
    %v520 = vadd.f32 %v427, %v519
    %521 = vmatprep.mubr.f32.mxu0 0.0
    %v522 = vand.u32 %v70, 4294901760
    %523 = vmatmul.mubr.f32.gmra.mrb[0].mxu0 %v522
    %v524 = vpop.f32.mrb[0].mxu0
    %v525 = vadd.f32 %v434, %v524
    %v526 = vpop.f32.mrb[0].mxu0
    %v527 = vadd.f32 %v436, %v526
    %528 = vdwg.mxu0
    %v529 = vand.u32 %v48, 4294901760
    %530 = vmatprep.subr.mxu0 %v529
    %v531 = vand.u32 %v47, 4294901760
    %532 = vmatpush1.msra.mxu0 %v531
    %v533 = vand.u32 %v50, 4294901760
    %534 = vmatprep.subr.mxu0 %v533
    %v535 = vand.u32 %v49, 4294901760
    %536 = vmatpush1.msra.mxu0 %v535
    %537 = vmatprep.subr.mxu0 0.0
    %538 = vmatpush1.msra.mxu0 0.0
    %539 = vmatprep.subr.mxu0 0.0
    %540 = vmatpush1.msra.mxu0 0.0
    %541 = vmatprep.subr.mxu0 0.0
    %542 = vmatpush1.msra.mxu0 0.0
    %543 = vmatprep.subr.mxu0 0.0
    %544 = vmatpush1.msra.mxu0 0.0
    %545 = vmatprep.subr.mxu0 0.0
    %546 = vmatpush1.msra.mxu0 0.0
    %547 = vmatprep.subr.mxu0 0.0
    %548 = vmatpush1.msra.mxu0 0.0
    %549 = vmatprep.subr.mxu0 0.0
    %550 = vmatpush1.msra.mxu0 0.0
    %551 = vmatprep.subr.mxu0 0.0
    %552 = vmatpush1.msra.mxu0 0.0
    %553 = vmatprep.subr.mxu0 0.0
    %554 = vmatpush1.msra.mxu0 0.0
    %555 = vmatprep.subr.mxu0 0.0
    %556 = vmatpush1.msra.mxu0 0.0
    %557 = vmatprep.subr.mxu0 0.0
    %558 = vmatpush1.msra.mxu0 0.0
    %559 = vmatprep.subr.mxu0 0.0
    %560 = vmatpush1.msra.mxu0 0.0
    %561 = vmatprep.subr.mxu0 0.0
    %562 = vmatpush1.msra.mxu0 0.0
    %563 = vmatprep.subr.mxu0 0.0
    %564 = vmatpush1.msra.mxu0 0.0
    %565 = vmatprep.subr.mxu0 0.0
    %566 = vmatpush1.msra.mxu0 0.0
    %567 = vmatprep.subr.mxu0 0.0
    %568 = vmatpush1.msra.mxu0 0.0
    %569 = vmatprep.subr.mxu0 0.0
    %570 = vmatpush1.msra.mxu0 0.0
    %571 = vmatprep.subr.mxu0 0.0
    %572 = vmatpush1.msra.mxu0 0.0
    %573 = vmatprep.subr.mxu0 0.0
    %574 = vmatpush1.msra.mxu0 0.0
    %575 = vmatprep.subr.mxu0 0.0
    %576 = vmatpush1.msra.mxu0 0.0
    %577 = vmatprep.subr.mxu0 0.0
    %578 = vmatpush1.msra.mxu0 0.0
    %579 = vmatprep.subr.mxu0 0.0
    %580 = vmatpush1.msra.mxu0 0.0
    %581 = vmatprep.subr.mxu0 0.0
    %582 = vmatpush1.msra.mxu0 0.0
    %583 = vmatprep.subr.mxu0 0.0
    %584 = vmatpush1.msra.mxu0 0.0
    %585 = vmatprep.subr.mxu0 0.0
    %586 = vmatpush1.msra.mxu0 0.0
    %587 = vmatprep.subr.mxu0 0.0
    %588 = vmatpush1.msra.mxu0 0.0
    %589 = vmatprep.subr.mxu0 0.0
    %590 = vmatpush1.msra.mxu0 0.0
    %591 = vmatprep.subr.mxu0 0.0
    %592 = vmatpush1.msra.mxu0 0.0
    %593 = vmatprep.subr.mxu0 0.0
    %594 = vmatpush1.msra.mxu0 0.0
    %595 = vmatprep.subr.mxu0 0.0
    %596 = vmatpush1.msra.mxu0 0.0
    %597 = vmatprep.mubr.f32.mxu0 0.0
    %v598 = vand.u32 %v67, 4294901760
    %599 = vmatmul.mubr.f32.gmra.mrb[0].mxu0 %v598
    %v600 = vpop.f32.mrb[0].mxu0
    %v601 = vadd.f32 %v518, %v600
    %v602 = vpop.f32.mrb[0].mxu0
    %v603 = vadd.f32 %v520, %v602
    %604 = vmatprep.mubr.f32.mxu0 0.0
    %v605 = vand.u32 %v70, 4294901760
    %606 = vmatmul.mubr.f32.gmra.mrb[0].mxu0 %v605
    %v607 = vpop.f32.mrb[0].mxu0
    %v608 = vadd.f32 %v525, %v607
    %v609 = vpop.f32.mrb[0].mxu0
    %v610 = vadd.f32 %v527, %v609
    %611 = vdwg.mxu0
    %v612 = vsel %vm65, %v63, 0.0
    %613 = vadd.xlane.f32.xlu0 %v612
    %v614 = vpop.xlane.xlu0 %613
    %v615 = vsel %vm65, %v64, 0.0
    %616 = vadd.xlane.f32.xlu0 %v615
    %v617 = vpop.xlane.xlu0 %616
    %v618 = vmax.f32 %v614, 1.0
    %v619 = vmax.f32 %v617, 1.0
    %v620 = vrcp.pop %v618
    %v621 = vmul.f32 %v601, %v620
    %v622 = vmul.f32 %v603, %v620
    %v623 = vrcp.pop %v619
    %v624 = vmul.f32 %v608, %v623
    %v625 = vmul.f32 %v610, %v623
    %v626 = vmul.f32 %v43, 0.9
    %v627 = vmul.f32 %v44, 0.9
    %v628 = vmul.f32 %v45, 0.9
    %v629 = vmul.f32 %v46, 0.9
    %v630 = vmul.f32 %v621, 0.1
    %v631 = vmul.f32 %v622, 0.1
    %v632 = vmul.f32 %v624, 0.1
    %v633 = vmul.f32 %v625, 0.1
    %v634 = vadd.f32 %v626, %v630
    %v635 = vadd.f32 %v627, %v631
    %v636 = vadd.f32 %v628, %v632
    %v637 = vadd.f32 %v629, %v633
    %vm638 = vcmp.gt.f32.partialorder %v614, 0.0
    %vm639 = vcmp.gt.f32.partialorder %v617, 0.0
    %v640 = vsel %vm638, 1, 0
    %v641 = vsel %vm639, 1, 0
    %vm642 = vcmp.eq.s32.totalorder %v640, 1
    %vm643 = vcmp.eq.s32.totalorder %v641, 1
    %v644 = vsel %vm642, %v634, %v43
    %v645 = vsel %vm642, %v635, %v44
    %v646 = vsel %vm643, %v636, %v45
    %v647 = vsel %vm643, %v637, %v46
    %648 = vst [vmem:[#allocation7] sm:$0xff] %v644
    %649 = vst [vmem:[#allocation7 + $0x8] sm:$0xff] %v645
    %650 = vst [vmem:[#allocation7 + $0x10] sm:$0xff] %v646
    %651 = vst [vmem:[#allocation7 + $0x18] sm:$0xff] %v647
    // Predicated region
    $region22: #{tpu_custom_call.1} parent=1 // pred_check
      _
    $region23: #{tpu_custom_call.1} parent=1 // pred_check_branch
      %653 = sbr.rel (0) target = $region25
    $region24: #{tpu_custom_call.1} parent=1 // pred_region
      %s655 = ssub.s32 512, 512
      %656 = vsyncadd [#allocation4], %s655
      %s657 = sshll.u32 [#allocation7], 4
      %s658 = int_to_ptr.vmem [resolvable:$true] %s657
      %663 = dma.vmem_to_hbm [thread:$0]  %s658, 512, %s3, [#allocation4], 256, 256, 16
    $region25: #{tpu_custom_call.1} parent=1 // pred_fallthru
      _
    // Predicated region
    $region26: #{tpu_custom_call.1} parent=1 // pred_check
      _
    $region27: #{tpu_custom_call.1} parent=1 // pred_check_branch
      %665 = sbr.rel (0) target = $region29
    $region28: #{tpu_custom_call.1} parent=1 // pred_region
      %666 = dma.done [#allocation4], 512
    $region29: #{tpu_custom_call.1} parent=1 // pred_fallthru
      _
    %667 = vsyncpa [#allocation3], 1
    %668 = vsyncpa [#allocation6], 1
    %669 = vsyncpa [#allocation4], 1

</llo_original>
